<compile_context>
chip_gen: v6e
topology: v6e:2x2x1
jax: 0.10.0
libtpu: 0.0.40
codegen_flags: <defaults>
</compile_context>

<pallas_src>
import math
from functools import partial

import jax
import jax.numpy as jnp
from jax.experimental import pallas as pl
from jax.experimental.pallas import tpu as pltpu

_LN_EPS = 1e-5
_INV_SQRT2 = 1.0 / math.sqrt(2.0)


def _round_up(x, m):
    return ((x + m - 1) // m) * m


def _layernorm_cf(h, gamma, beta):
    """LayerNorm over the channel axis for channels-first (C, T) tiles."""
    mu = jnp.mean(h, axis=0, keepdims=True)
    var = jnp.mean((h - mu) * (h - mu), axis=0, keepdims=True)
    return (h - mu) * jax.lax.rsqrt(var + _LN_EPS) * gamma + beta


def _gelu_exact(x):
    # PyTorch nn.GELU() default (erf-based, not tanh approximation)
    return 0.5 * x * (1.0 + jax.lax.erf(x * _INV_SQRT2))


def _flat_linear_kernel(use_norm, use_act,
                        x_ref, w1_ref, p1_ref, w2_ref, p2_ref, o_ref):
    # x block: (C_in, T) with tokens on lanes (lane-dense, T % 128 == 0).
    x = x_ref[...].astype(w1_ref.dtype)
    p1 = p1_ref[...].astype(jnp.float32)   # (C_mid, 3) = [bias | gamma | beta]
    p2 = p2_ref[...].astype(jnp.float32)   # (C_out, 3) = [bias | gamma | beta]

    # proj: (C_mid, C_in) @ (C_in, T) -> (C_mid, T), f32 accumulation.
    h = jnp.dot(w1_ref[...], x, preferred_element_type=jnp.float32)
    h = h + p1[:, 0:1]
    if use_norm:
        h = _layernorm_cf(h, p1[:, 1:2], p1[:, 2:3])
    if use_act:
        h = _gelu_exact(h)

    # proj2: (C_out, C_mid) @ (C_mid, T) -> (C_out, T).
    y = jnp.dot(w2_ref[...], h.astype(w2_ref.dtype),
                preferred_element_type=jnp.float32)
    y = y + p2[:, 0:1]
    if use_norm:
        y = _layernorm_cf(y, p2[:, 1:2], p2[:, 2:3])

    o_ref[...] = y.astype(o_ref.dtype)


def flat_linear_forward(x, params, *, use_norm=True, use_act=True,
                        re_construct=True, tile_n=512):
    """x: (B, C_in, H, W) NCHW, exactly like the PyTorch module."""
    B, C_in, H, W = x.shape
    w1, b1, g1, be1, w2, b2, g2, be2 = params   # weights in (out, in) layout
    C_mid = w1.shape[0]
    C_out = w2.shape[0]
    HW = H * W

    # Lane-aligned token tile, clamped to the (padded) token count.
    tile_n = max(128, min(_round_up(tile_n, 128), _round_up(HW, 128)))
    HW_pad = _round_up(HW, tile_n)

    # Channels-first flatten is a pure reshape (no transpose / HBM shuffle).
    xf = x.reshape(B, C_in, HW)
    if HW_pad != HW:
        xf = jnp.pad(xf, ((0, 0), (0, 0), (0, HW_pad - HW)))

    # Pack per-stage vector params: columns = [bias, gamma, beta].
    p1 = jnp.stack([b1, g1, be1], axis=-1)   # (C_mid, 3)
    p2 = jnp.stack([b2, g2, be2], axis=-1)   # (C_out, 3)

    n_tiles = HW_pad // tile_n
    kernel = partial(_flat_linear_kernel, use_norm, use_act)

    # VMEM budget: double-buffered x/out blocks + weights + f32 intermediates.
    act_item = jnp.dtype(x.dtype).itemsize
    w_item = jnp.dtype(w1.dtype).itemsize
    vmem_est = 2 * tile_n * (C_in * act_item + C_out * act_item)      # x/out DMA bufs
    vmem_est += 4 * tile_n * (C_mid + C_out)                          # f32 h / y
    vmem_est += 2 * w_item * (C_mid * C_in + C_out * C_mid)           # weights
    vmem_est += 2 * 4 * 3 * (C_mid + C_out)                           # packed params
    vmem_limit = int(min(max(2 * vmem_est, 32 * 2**20), 64 * 2**20))  # v7x-safe cap

    out = pl.pallas_call(
        kernel,
        out_shape=jax.ShapeDtypeStruct((B, C_out, HW_pad), x.dtype),
        grid_spec=pltpu.PrefetchScalarGridSpec(
            num_scalar_prefetch=0,
            grid=(B, n_tiles),
            in_specs=[
                pl.BlockSpec((None, C_in, tile_n), lambda b, j: (b, 0, j)),  # x
                pl.BlockSpec((C_mid, C_in), lambda b, j: (0, 0)),            # w1
                pl.BlockSpec((C_mid, 3), lambda b, j: (0, 0)),               # b1/g1/be1
                pl.BlockSpec((C_out, C_mid), lambda b, j: (0, 0)),           # w2
                pl.BlockSpec((C_out, 3), lambda b, j: (0, 0)),               # b2/g2/be2
            ],
            out_specs=pl.BlockSpec((None, C_out, tile_n),
                                   lambda b, j: (b, 0, j)),
        ),
        compiler_params=pltpu.CompilerParams(
            dimension_semantics=("parallel", "parallel"),
            vmem_limit_bytes=vmem_limit),
    )(xf, w1, p1, w2, p2)

    out = out[:, :, :HW]
    if re_construct:
        # Already channels-first: free reshape, no transpose.
        return out.reshape(B, C_out, H, W)
    # Module's re_construct=False path returns token layout (B, H*W, C_out).
    return jnp.transpose(out, (0, 2, 1))


def init_params(key, in_features, out_features):
    """Deterministic synthetic params; weights in PyTorch (out, in) layout."""
    c_mid = out_features // 2
    k1, k2, k3, k4, k5, k6, k7, k8 = jax.random.split(key, 8)
    bnd1 = 1.0 / math.sqrt(in_features)
    bnd2 = 1.0 / math.sqrt(c_mid)
    w1 = jax.random.uniform(k1, (c_mid, in_features), jnp.float32, -bnd1, bnd1)
    b1 = jax.random.uniform(k2, (c_mid,), jnp.float32, -bnd1, bnd1)
    w2 = jax.random.uniform(k3, (out_features, c_mid), jnp.float32, -bnd2, bnd2)
    b2 = jax.random.uniform(k4, (out_features,), jnp.float32, -bnd2, bnd2)
    # LayerNorm affine params (synthetic, non-trivial to exercise them).
    g1 = 1.0 + 0.1 * jax.random.normal(k5, (c_mid,), jnp.float32)
    be1 = 0.1 * jax.random.normal(k6, (c_mid,), jnp.float32)
    g2 = 1.0 + 0.1 * jax.random.normal(k7, (out_features,), jnp.float32)
    be2 = 0.1 * jax.random.normal(k8, (out_features,), jnp.float32)
    return (w1, b1, g1, be1, w2, b2, g2, be2)


def _reference(x, params, *, use_norm=True, use_act=True, re_construct=True):
    """Pure-JAX reference mirroring the PyTorch module (token layout)."""
    B, C, H, W = x.shape
    w1, b1, g1, be1, w2, b2, g2, be2 = params
    t = jnp.transpose(x.reshape(B, C, H * W), (0, 2, 1))     # (B, HW, C_in)
    h = t @ w1.T + b1
    if use_norm:
        mu = jnp.mean(h, -1, keepdims=True)
        var = jnp.mean((h - mu) ** 2, -1, keepdims=True)
        h = (h - mu) * jax.lax.rsqrt(var + _LN_EPS) * g1 + be1
    if use_act:
        h = _gelu_exact(h)
    y = h @ w2.T + b2
    if use_norm:
        mu = jnp.mean(y, -1, keepdims=True)
        var = jnp.mean((y - mu) ** 2, -1, keepdims=True)
        y = (y - mu) * jax.lax.rsqrt(var + _LN_EPS) * g2 + be2
    if re_construct:
        return jnp.transpose(y, (0, 2, 1)).reshape(B, -1, H, W)
    return y


if __name__ == "__main__":
    key = jax.random.PRNGKey(0)
    kx, kp, kx2 = jax.random.split(key, 3)

    B, C_in, H, W = 2, 4, 16, 16
    out_features = 32  # -> hidden (out_features // 2) = 16

    x = jax.random.normal(kx, (B, C_in, H, W), jnp.float32)
    params = init_params(kp, C_in, out_features)

    # Main check: norm + act + re_construct (NCHW out).
    out = flat_linear_forward(x, params, use_norm=True, use_act=True,
                              re_construct=True)
    out = jax.block_until_ready(out)
    ref = _reference(x, params, use_norm=True, use_act=True, re_construct=True)
    assert out.shape == (B, out_features, H, W)
    assert jnp.allclose(out, ref, atol=1e-4, rtol=1e-4), "mismatch vs reference"

    # Ragged-token check: H*W not a multiple of 128, token-layout output.
    H2, W2 = 10, 10
    x2 = jax.random.normal(kx2, (B, C_in, H2, W2), jnp.float32)
    out2 = flat_linear_forward(x2, params, use_norm=True, use_act=True,
                               re_construct=False)
    out2 = jax.block_until_ready(out2)
    ref2 = _reference(x2, params, use_norm=True, use_act=True,
                      re_construct=False)
    assert out2.shape == (B, H2 * W2, out_features)
    assert jnp.allclose(out2, ref2, atol=1e-4, rtol=1e-4), "ragged mismatch"

    print("KERNEL_OK")
</pallas_src>

<mosaic_0001>
module attributes {stable_mosaic.version = 11 : i64} {
  func.func @_flat_linear_kernel(%arg0: i32, %arg1: i32, %arg2: memref<1x4x256xf32, #tpu.memory_space<vmem>>, %arg3: memref<16x4xf32, #tpu.memory_space<vmem>>, %arg4: memref<16x3xf32, #tpu.memory_space<vmem>>, %arg5: memref<32x16xf32, #tpu.memory_space<vmem>>, %arg6: memref<32x3xf32, #tpu.memory_space<vmem>>, %arg7: memref<1x32x256xf32, #tpu.memory_space<vmem>>) attributes {dimension_semantics = [#tpu.dimension_semantics<parallel>, #tpu.dimension_semantics<parallel>], iteration_bounds = array<i64: 2, 1>, scalar_prefetch = 0 : i64, scratch_operands = 0 : i64, tpu.core_type = #tpu.core_type<tc>, window_params = [{transform_indices = @transform_0, window_bounds = array<i64: 1, 4, 256>}, {pipeline_mode = #tpu.pipeline_mode<synchronous>, transform_indices = @transform_1, window_bounds = array<i64: 16, 4>}, {pipeline_mode = #tpu.pipeline_mode<synchronous>, transform_indices = @transform_2, window_bounds = array<i64: 16, 3>}, {pipeline_mode = #tpu.pipeline_mode<synchronous>, transform_indices = @transform_3, window_bounds = array<i64: 32, 16>}, {pipeline_mode = #tpu.pipeline_mode<synchronous>, transform_indices = @transform_4, window_bounds = array<i64: 32, 3>}, {transform_indices = @transform_5, window_bounds = array<i64: 1, 32, 256>}]} {
    %c0 = arith.constant 0 : index
    %c0_0 = arith.constant 0 : index
    %c0_1 = arith.constant 0 : index
    %0 = vector.load %arg2[%c0, %c0_0, %c0_1] : memref<1x4x256xf32, #tpu.memory_space<vmem>>, vector<1x4x256xf32>
    %1 = vector.shape_cast %0 : vector<1x4x256xf32> to vector<4x256xf32>
    %c0_2 = arith.constant 0 : index
    %c0_3 = arith.constant 0 : index
    %2 = vector.load %arg4[%c0_2, %c0_3] : memref<16x3xf32, #tpu.memory_space<vmem>>, vector<16x3xf32>
    %c0_4 = arith.constant 0 : index
    %c0_5 = arith.constant 0 : index
    %3 = vector.load %arg6[%c0_4, %c0_5] : memref<32x3xf32, #tpu.memory_space<vmem>>, vector<32x3xf32>
    %c0_6 = arith.constant 0 : index
    %c0_7 = arith.constant 0 : index
    %4 = vector.load %arg3[%c0_6, %c0_7] : memref<16x4xf32, #tpu.memory_space<vmem>>, vector<16x4xf32>
    %cst = arith.constant dense<0.000000e+00> : vector<16x256xf32>
    %5 = tpu.matmul %4, %1, %cst {dimension_numbers = #tpu.dot_dimension_numbers<[1], [0], [0], [1], [0, 0, 1, 1], [], []>} : vector<16x4xf32>, vector<4x256xf32>, vector<16x256xf32> -> vector<16x256xf32>
    %6 = vector.extract_strided_slice %2 {offsets = [0, 0], sizes = [16, 1], strides = [1, 1]} : vector<16x3xf32> to vector<16x1xf32>
    %7 = vector.broadcast %6 : vector<16x1xf32> to vector<16x256xf32>
    %8 = arith.addf %5, %7 : vector<16x256xf32>
    %9 = vector.extract_strided_slice %2 {offsets = [0, 1], sizes = [16, 1], strides = [1, 1]} : vector<16x3xf32> to vector<16x1xf32>
    %10 = vector.extract_strided_slice %2 {offsets = [0, 2], sizes = [16, 1], strides = [1, 1]} : vector<16x3xf32> to vector<16x1xf32>
    %cst_8 = arith.constant dense<0.000000e+00> : vector<256xf32>
    %11 = vector.multi_reduction <add>, %8, %cst_8 [0] : vector<16x256xf32> to vector<256xf32>
    %12 = vector.shape_cast %11 : vector<256xf32> to vector<1x256xf32>
    %cst_9 = arith.constant 1.600000e+01 : f32
    %13 = vector.broadcast %cst_9 : f32 to vector<1x256xf32>
    %14 = arith.divf %12, %13 : vector<1x256xf32>
    %15 = vector.broadcast %14 : vector<1x256xf32> to vector<16x256xf32>
    %16 = arith.subf %8, %15 : vector<16x256xf32>
    %17 = vector.broadcast %14 : vector<1x256xf32> to vector<16x256xf32>
    %18 = arith.subf %8, %17 : vector<16x256xf32>
    %19 = arith.mulf %16, %18 : vector<16x256xf32>
    %cst_10 = arith.constant dense<0.000000e+00> : vector<256xf32>
    %20 = vector.multi_reduction <add>, %19, %cst_10 [0] : vector<16x256xf32> to vector<256xf32>
    %21 = vector.shape_cast %20 : vector<256xf32> to vector<1x256xf32>
    %cst_11 = arith.constant 1.600000e+01 : f32
    %22 = vector.broadcast %cst_11 : f32 to vector<1x256xf32>
    %23 = arith.divf %21, %22 : vector<1x256xf32>
    %24 = vector.broadcast %14 : vector<1x256xf32> to vector<16x256xf32>
    %25 = arith.subf %8, %24 : vector<16x256xf32>
    %cst_12 = arith.constant 9.99999974E-6 : f32
    %26 = vector.broadcast %cst_12 : f32 to vector<1x256xf32>
    %27 = arith.addf %23, %26 : vector<1x256xf32>
    %28 = math.rsqrt %27 : vector<1x256xf32>
    %29 = vector.broadcast %28 : vector<1x256xf32> to vector<16x256xf32>
    %30 = arith.mulf %25, %29 : vector<16x256xf32>
    %31 = vector.broadcast %9 : vector<16x1xf32> to vector<16x256xf32>
    %32 = arith.mulf %30, %31 : vector<16x256xf32>
    %33 = vector.broadcast %10 : vector<16x1xf32> to vector<16x256xf32>
    %34 = arith.addf %32, %33 : vector<16x256xf32>
    %cst_13 = arith.constant 5.000000e-01 : f32
    %35 = vector.broadcast %cst_13 : f32 to vector<16x256xf32>
    %36 = arith.mulf %35, %34 : vector<16x256xf32>
    %cst_14 = arith.constant 0.707106769 : f32
    %37 = vector.broadcast %cst_14 : f32 to vector<16x256xf32>
    %38 = arith.mulf %34, %37 : vector<16x256xf32>
    %39 = math.erf %38 : vector<16x256xf32>
    %cst_15 = arith.constant 1.000000e+00 : f32
    %40 = vector.broadcast %cst_15 : f32 to vector<16x256xf32>
    %41 = arith.addf %40, %39 : vector<16x256xf32>
    %42 = arith.mulf %36, %41 : vector<16x256xf32>
    %c0_16 = arith.constant 0 : index
    %c0_17 = arith.constant 0 : index
    %43 = vector.load %arg5[%c0_16, %c0_17] : memref<32x16xf32, #tpu.memory_space<vmem>>, vector<32x16xf32>
    %cst_18 = arith.constant dense<0.000000e+00> : vector<32x256xf32>
    %44 = tpu.matmul %43, %42, %cst_18 {dimension_numbers = #tpu.dot_dimension_numbers<[1], [0], [0], [1], [0, 0, 1, 1], [], []>} : vector<32x16xf32>, vector<16x256xf32>, vector<32x256xf32> -> vector<32x256xf32>
    %45 = vector.extract_strided_slice %3 {offsets = [0, 0], sizes = [32, 1], strides = [1, 1]} : vector<32x3xf32> to vector<32x1xf32>
    %46 = vector.broadcast %45 : vector<32x1xf32> to vector<32x256xf32>
    %47 = arith.addf %44, %46 : vector<32x256xf32>
    %48 = vector.extract_strided_slice %3 {offsets = [0, 1], sizes = [32, 1], strides = [1, 1]} : vector<32x3xf32> to vector<32x1xf32>
    %49 = vector.extract_strided_slice %3 {offsets = [0, 2], sizes = [32, 1], strides = [1, 1]} : vector<32x3xf32> to vector<32x1xf32>
    %cst_19 = arith.constant dense<0.000000e+00> : vector<256xf32>
    %50 = vector.multi_reduction <add>, %47, %cst_19 [0] : vector<32x256xf32> to vector<256xf32>
    %51 = vector.shape_cast %50 : vector<256xf32> to vector<1x256xf32>
    %cst_20 = arith.constant 3.200000e+01 : f32
    %52 = vector.broadcast %cst_20 : f32 to vector<1x256xf32>
    %53 = arith.divf %51, %52 : vector<1x256xf32>
    %54 = vector.broadcast %53 : vector<1x256xf32> to vector<32x256xf32>
    %55 = arith.subf %47, %54 : vector<32x256xf32>
    %56 = vector.broadcast %53 : vector<1x256xf32> to vector<32x256xf32>
    %57 = arith.subf %47, %56 : vector<32x256xf32>
    %58 = arith.mulf %55, %57 : vector<32x256xf32>
    %cst_21 = arith.constant dense<0.000000e+00> : vector<256xf32>
    %59 = vector.multi_reduction <add>, %58, %cst_21 [0] : vector<32x256xf32> to vector<256xf32>
    %60 = vector.shape_cast %59 : vector<256xf32> to vector<1x256xf32>
    %cst_22 = arith.constant 3.200000e+01 : f32
    %61 = vector.broadcast %cst_22 : f32 to vector<1x256xf32>
    %62 = arith.divf %60, %61 : vector<1x256xf32>
    %63 = vector.broadcast %53 : vector<1x256xf32> to vector<32x256xf32>
    %64 = arith.subf %47, %63 : vector<32x256xf32>
    %cst_23 = arith.constant 9.99999974E-6 : f32
    %65 = vector.broadcast %cst_23 : f32 to vector<1x256xf32>
    %66 = arith.addf %62, %65 : vector<1x256xf32>
    %67 = math.rsqrt %66 : vector<1x256xf32>
    %68 = vector.broadcast %67 : vector<1x256xf32> to vector<32x256xf32>
    %69 = arith.mulf %64, %68 : vector<32x256xf32>
    %70 = vector.broadcast %48 : vector<32x1xf32> to vector<32x256xf32>
    %71 = arith.mulf %69, %70 : vector<32x256xf32>
    %72 = vector.broadcast %49 : vector<32x1xf32> to vector<32x256xf32>
    %73 = arith.addf %71, %72 : vector<32x256xf32>
    %c0_24 = arith.constant 0 : index
    %c0_25 = arith.constant 0 : index
    %c0_26 = arith.constant 0 : index
    %74 = vector.load %arg7[%c0_24, %c0_25, %c0_26] : memref<1x32x256xf32, #tpu.memory_space<vmem>>, vector<1x32x256xf32>
    %75 = vector.shape_cast %74 : vector<1x32x256xf32> to vector<32x256xf32>
    %76 = vector.shape_cast %73 : vector<32x256xf32> to vector<1x32x256xf32>
    tpu.vector_store %arg7[%c0_24, %c0_25, %c0_26], %76 {strides = array<i32>} : memref<1x32x256xf32, #tpu.memory_space<vmem>>, vector<1x32x256xf32>,
    return
  }
  func.func @transform_0(%arg0: i32, %arg1: i32) -> (i32, i32, i32) {
    %c0_i32 = arith.constant 0 : i32
    %c0_i32_0 = arith.constant 0 : i32
    return %arg0, %c0_i32, %arg1 : i32, i32, i32
  }
  func.func @transform_1(%arg0: i32, %arg1: i32) -> (i32, i32) {
    %c0_i32 = arith.constant 0 : i32
    %c0_i32_0 = arith.constant 0 : i32
    %c0_i32_1 = arith.constant 0 : i32
    return %c0_i32, %c0_i32_0 : i32, i32
  }
  func.func @transform_2(%arg0: i32, %arg1: i32) -> (i32, i32) {
    %c0_i32 = arith.constant 0 : i32
    %c0_i32_0 = arith.constant 0 : i32
    %c0_i32_1 = arith.constant 0 : i32
    return %c0_i32, %c0_i32_0 : i32, i32
  }
  func.func @transform_3(%arg0: i32, %arg1: i32) -> (i32, i32) {
    %c0_i32 = arith.constant 0 : i32
    %c0_i32_0 = arith.constant 0 : i32
    %c0_i32_1 = arith.constant 0 : i32
    return %c0_i32, %c0_i32_0 : i32, i32
  }
  func.func @transform_4(%arg0: i32, %arg1: i32) -> (i32, i32) {
    %c0_i32 = arith.constant 0 : i32
    %c0_i32_0 = arith.constant 0 : i32
    %c0_i32_1 = arith.constant 0 : i32
    return %c0_i32, %c0_i32_0 : i32, i32
  }
  func.func @transform_5(%arg0: i32, %arg1: i32) -> (i32, i32, i32) {
    %c0_i32 = arith.constant 0 : i32
    %c0_i32_0 = arith.constant 0 : i32
    return %arg0, %c0_i32, %arg1 : i32, i32, i32
  }
}

</mosaic_0001>

<llo_original>
// kernel: tpu_custom_call.1
$region0: #{tpu_custom_call.1}
  #allocation0 [shape = 'u32[]', space=smem, size = 0x4, offset = 0x4, fixed_abs, tag = 'smem constant byte address 0x4 - core index']
  #allocation1 [shape = 'u32[144,128]{1,0:T(1,128)}', space=vmem, size = 0x12000, scoped, tag = 'internal scratch']
  %s0 = inlined_call_operand.vmem [shape: f32[2,4,256], index: 0, kind: input, shape index: {}]
  %s1 = inlined_call_operand.vmem [shape: f32[16,4], index: 1, kind: input, shape index: {}]
  %s2 = inlined_call_operand.vmem [shape: f32[16,3], index: 2, kind: input, shape index: {}]
  %s3 = inlined_call_operand.vmem [shape: f32[32,16], index: 3, kind: input, shape index: {}]
  %s4 = inlined_call_operand.vmem [shape: f32[32,3], index: 4, kind: input, shape index: {}]
  %s5 = inlined_call_operand.hbm [shape: f32[2,32,256], index: 5, kind: output, shape index: {}]
  %s6 = sld [smem:[#allocation0]]
  $region53: #{tpu_custom_call.1} parent=0
    _
  %s8 = ssub.s32 1, %s6
  %s9 = scalar_select 0, %s8, %s6
  $region1: #{tpu_custom_call.1} parent=0
    #allocation2 [shape = 'u8[65536]{0}', space=vmem, size = 0x10000, scoped, tag = 'output window, operand 0']
    #allocation3 [shape = 's32[2]{0}', space=sflag, size = 0x8, scoped, tag = 'scoped memory for tpu_custom_call.1']
    %10 = vsyncpa [#allocation3], 0
    %s11 = scalar_lea.sflag [#allocation3], 1
    %12 = vsyncpa %s11, 0
    loop: start=0, step=1, limit=4
    $region2: #{tpu_custom_call.1} parent=1 // loop_pre_header
      _
    $region3: #{tpu_custom_call.1} parent=1 // loop_header
      %s14 = sphi 0, %s18
      %p15 = scmp.ge.s32.totalorder %s14, 4
      %s21 = sphi 0, %s33
      %s22 = sphi 0, %s29
      %s23 = sphi 0, %s21
      %s24 = sphi 0, %s22
      %s25 = sphi 0, %s23
      %s26 = sphi 0, %s24
      %s38 = sphi 0, %s40
      %s41 = sphi 0, %s38
      %s42 = sphi 0, %s41
      %s58 = sphi 0, %s42
      %s62 = sphi 0, %s62
      %s64 = sphi 0, %s62
      %s65 = sphi 0, %s64
      %s79 = sphi 0, %s65
      %s83 = sphi 0, %s83
      %s85 = sphi 0, %s83
      %s86 = sphi 0, %s85
      %s100 = sphi 0, %s86
      %s104 = sphi 0, %s104
      %s106 = sphi 0, %s104
      %s107 = sphi 0, %s106
      %s121 = sphi 0, %s107
      %s125 = sphi 0, %s125
      %s127 = sphi 0, %s125
      %s128 = sphi 0, %s127
      %s142 = sphi 0, %s128
      %s150 = sphi 0, %s152
      %s153 = sphi 0, %s150
      %s154 = sphi 0, %s153
      %s170 = sphi 0, %s154
    $region4: #{tpu_custom_call.1} parent=1 // loop_header_branch
      %17 = sbr.rel (%p15) target = $region8
    $region5: #{tpu_custom_call.1} parent=1 // loop_body
      %s19 = ssub.s32 %s14, 1
      %s20 = ssub.s32 %s14, 2
      %s27 = sadd.s32 1, %s22
      %p28 = scmp.ge.s32.totalorder %s27, 1
      %s29 = scalar_select %p28, 0, %s27
      %s30 = sadd.s32 1, %s21
      %s31 = scalar_select %p28, %s30, %s21
      %p32 = scmp.ge.s32.totalorder %s31, 2
      %s33 = scalar_select %p32, 0, %s31
      %s34 = ssub.s32 %s21, %s33
      %s35 = ssub.s32 %s22, %s29
      %s36 = sor.u32 %s34, %s35
      %p37 = scmp.eq.s32.totalorder %s36, 0
      %s39 = sadd.s32 %s38, 1
      %s40 = scalar_select %p37, %s38, %s39
      %p43 = pneg %p37
      %p44 = scmp.eq.s32.totalorder %s14, 1
      %p45 = por %p43, %p44
      %p46 = scmp.ne.s32.totalorder %s38, %s41
      %p47 = scmp.eq.s32.totalorder %s14, 0
      %p48 = por %p46, %p47
      %p49 = scmp.ne.s32.totalorder %s38, %s41
      %p50 = scmp.eq.s32.totalorder %s19, 1
      %p51 = por %p49, %p50
      %p52 = scmp.ne.s32.totalorder %s41, %s42
      %p53 = scmp.eq.s32.totalorder %s19, 0
      %p54 = por %p52, %p53
      %p55 = scmp.ne.s32.totalorder %s41, %s42
      %p56 = scmp.eq.s32.totalorder %s20, 1
      %p57 = por %p55, %p56
      %p59 = scmp.ne.s32.totalorder %s42, %s58
      %p60 = scmp.eq.s32.totalorder %s20, 0
      %p61 = por %p59, %p60
      %s63 = sadd.s32 %s62, 1
      %p66 = scmp.eq.s32.totalorder %s14, 1
      %p67 = scmp.ne.s32.totalorder %s62, %s64
      %p68 = scmp.eq.s32.totalorder %s14, 0
      %p69 = por %p67, %p68
      %p70 = scmp.ne.s32.totalorder %s62, %s64
      %p71 = scmp.eq.s32.totalorder %s19, 1
      %p72 = por %p70, %p71
      %p73 = scmp.ne.s32.totalorder %s64, %s65
      %p74 = scmp.eq.s32.totalorder %s19, 0
      %p75 = por %p73, %p74
      %p76 = scmp.ne.s32.totalorder %s64, %s65
      %p77 = scmp.eq.s32.totalorder %s20, 1
      %p78 = por %p76, %p77
      %p80 = scmp.ne.s32.totalorder %s65, %s79
      %p81 = scmp.eq.s32.totalorder %s20, 0
      %p82 = por %p80, %p81
      %s84 = sadd.s32 %s83, 1
      %p87 = scmp.eq.s32.totalorder %s14, 1
      %p88 = scmp.ne.s32.totalorder %s83, %s85
      %p89 = scmp.eq.s32.totalorder %s14, 0
      %p90 = por %p88, %p89
      %p91 = scmp.ne.s32.totalorder %s83, %s85
      %p92 = scmp.eq.s32.totalorder %s19, 1
      %p93 = por %p91, %p92
      %p94 = scmp.ne.s32.totalorder %s85, %s86
      %p95 = scmp.eq.s32.totalorder %s19, 0
      %p96 = por %p94, %p95
      %p97 = scmp.ne.s32.totalorder %s85, %s86
      %p98 = scmp.eq.s32.totalorder %s20, 1
      %p99 = por %p97, %p98
      %p101 = scmp.ne.s32.totalorder %s86, %s100
      %p102 = scmp.eq.s32.totalorder %s20, 0
      %p103 = por %p101, %p102
      %s105 = sadd.s32 %s104, 1
      %p108 = scmp.eq.s32.totalorder %s14, 1
      %p109 = scmp.ne.s32.totalorder %s104, %s106
      %p110 = scmp.eq.s32.totalorder %s14, 0
      %p111 = por %p109, %p110
      %p112 = scmp.ne.s32.totalorder %s104, %s106
      %p113 = scmp.eq.s32.totalorder %s19, 1
      %p114 = por %p112, %p113
      %p115 = scmp.ne.s32.totalorder %s106, %s107
      %p116 = scmp.eq.s32.totalorder %s19, 0
      %p117 = por %p115, %p116
      %p118 = scmp.ne.s32.totalorder %s106, %s107
      %p119 = scmp.eq.s32.totalorder %s20, 1
      %p120 = por %p118, %p119
      %p122 = scmp.ne.s32.totalorder %s107, %s121
      %p123 = scmp.eq.s32.totalorder %s20, 0
      %p124 = por %p122, %p123
      %s126 = sadd.s32 %s125, 1
      %p129 = scmp.eq.s32.totalorder %s14, 1
      %p130 = scmp.ne.s32.totalorder %s125, %s127
      %p131 = scmp.eq.s32.totalorder %s14, 0
      %p132 = por %p130, %p131
      %p133 = scmp.ne.s32.totalorder %s125, %s127
      %p134 = scmp.eq.s32.totalorder %s19, 1
      %p135 = por %p133, %p134
      %p136 = scmp.ne.s32.totalorder %s127, %s128
      %p137 = scmp.eq.s32.totalorder %s19, 0
      %p138 = por %p136, %p137
      %p139 = scmp.ne.s32.totalorder %s127, %s128
      %p140 = scmp.eq.s32.totalorder %s20, 1
      %p141 = por %p139, %p140
      %p143 = scmp.ne.s32.totalorder %s128, %s142
      %p144 = scmp.eq.s32.totalorder %s20, 0
      %p145 = por %p143, %p144
      %s146 = ssub.s32 %s21, %s33
      %s147 = ssub.s32 %s22, %s29
      %s148 = sor.u32 %s146, %s147
      %p149 = scmp.eq.s32.totalorder %s148, 0
      %s151 = sadd.s32 %s150, 1
      %s152 = scalar_select %p149, %s150, %s151
      %p155 = pneg %p149
      %p156 = scmp.eq.s32.totalorder %s14, 1
      %p157 = por %p155, %p156
      %p158 = scmp.ne.s32.totalorder %s150, %s153
      %p159 = scmp.eq.s32.totalorder %s14, 0
      %p160 = por %p158, %p159
      %p161 = scmp.ne.s32.totalorder %s150, %s153
      %p162 = scmp.eq.s32.totalorder %s19, 1
      %p163 = por %p161, %p162
      %p164 = scmp.ne.s32.totalorder %s153, %s154
      %p165 = scmp.eq.s32.totalorder %s19, 0
      %p166 = por %p164, %p165
      %p167 = scmp.ne.s32.totalorder %s153, %s154
      %p168 = scmp.eq.s32.totalorder %s20, 1
      %p169 = por %p167, %p168
      %p171 = scmp.ne.s32.totalorder %s154, %s170
      %p172 = scmp.eq.s32.totalorder %s20, 0
      %p173 = por %p171, %p172
      %p174 = scmp.le.s32.totalorder 1, %s14
      %p175 = scmp.lt.s32.totalorder %s14, 3
      %p176 = pnand %p174, %p175
      %p177 = pneg %p176
      // Predicated region
      $region9: #{tpu_custom_call.1} parent=5 // pred_check
        _
      $region10: #{tpu_custom_call.1} parent=5 // pred_check_branch
        %179 = sbr.rel (%p176) target = $region12
      $region11: #{tpu_custom_call.1} parent=5 // pred_region
        %s180 = ssub.s32 %s14, 1
        // Predicated region
        $region13: #{tpu_custom_call.1} parent=11 // pred_check
          %p181 = pneg %p75
        $region14: #{tpu_custom_call.1} parent=11 // pred_check_branch
          %183 = sbr.rel (%p181) target = $region16
        $region15: #{tpu_custom_call.1} parent=11 // pred_region
          _
        $region16: #{tpu_custom_call.1} parent=11 // pred_fallthru
          _
        // Predicated region
        $region17: #{tpu_custom_call.1} parent=11 // pred_check
          %p184 = pneg %p96
        $region18: #{tpu_custom_call.1} parent=11 // pred_check_branch
          %186 = sbr.rel (%p184) target = $region20
        $region19: #{tpu_custom_call.1} parent=11 // pred_region
          _
        $region20: #{tpu_custom_call.1} parent=11 // pred_fallthru
          _
        // Predicated region
        $region21: #{tpu_custom_call.1} parent=11 // pred_check
          %p187 = pneg %p117
        $region22: #{tpu_custom_call.1} parent=11 // pred_check_branch
          %189 = sbr.rel (%p187) target = $region24
        $region23: #{tpu_custom_call.1} parent=11 // pred_region
          _
        $region24: #{tpu_custom_call.1} parent=11 // pred_fallthru
          _
        // Predicated region
        $region25: #{tpu_custom_call.1} parent=11 // pred_check
          %p190 = pneg %p138
        $region26: #{tpu_custom_call.1} parent=11 // pred_check_branch
          %192 = sbr.rel (%p190) target = $region28
        $region27: #{tpu_custom_call.1} parent=11 // pred_region
          _
        $region28: #{tpu_custom_call.1} parent=11 // pred_fallthru
          _
      $region12: #{tpu_custom_call.1} parent=5 // pred_fallthru
        _
      %p193 = scmp.lt.s32.totalorder %s14, 2
      // Predicated region
      $region29: #{tpu_custom_call.1} parent=5 // pred_check
        %p194 = pneg %p193
      $region30: #{tpu_custom_call.1} parent=5 // pred_check_branch
        %196 = sbr.rel (%p194) target = $region32
      $region31: #{tpu_custom_call.1} parent=5 // pred_region
        // Predicated region
        $region33: #{tpu_custom_call.1} parent=31 // pred_check
          %p197 = pneg %p48
        $region34: #{tpu_custom_call.1} parent=31 // pred_check_branch
          %199 = sbr.rel (%p197) target = $region36
        $region35: #{tpu_custom_call.1} parent=31 // pred_region
          %s200 = smul.u32 2, %s22
          %p201 = scmp.lt.s32.totalorder %s21, 1
          %s202 = scalar_select %p201, %s21, 1
          %p203 = scmp.lt.s32.totalorder %s200, 1
          %s204 = scalar_select %p203, %s200, 1
          %s205 = smul.addr %s202, 2
          %s206 = sadd.s32 %s204, %s205
          %s207 = smul.addr %s206, 4
          %s208 = scalar_lea.vmem %s0, %s207
          %s209 = smul.u32 2, %s22
        $region36: #{tpu_custom_call.1} parent=31 // pred_fallthru
          _
      $region32: #{tpu_custom_call.1} parent=5 // pred_fallthru
        _
      %p210 = scmp.le.s32.totalorder 1, %s14
      %p211 = scmp.lt.s32.totalorder %s14, 3
      %p212 = pnand %p210, %p211
      %p213 = pneg %p212
      // Predicated region
      $region37: #{tpu_custom_call.1} parent=5 // pred_check
        _
      $region38: #{tpu_custom_call.1} parent=5 // pred_check_branch
        %215 = sbr.rel (%p212) target = $region40
      $region39: #{tpu_custom_call.1} parent=5 // pred_region
        %s216 = ssub.s32 %s14, 1
        %s217 = smul.u32 2, %s24
        %p218 = scmp.lt.s32.totalorder %s23, 1
        %s219 = scalar_select %p218, %s23, 1
        %p220 = scmp.lt.s32.totalorder %s217, 1
        %s221 = scalar_select %p220, %s217, 1
        %s222 = smul.addr %s219, 2
        %s223 = sadd.s32 %s221, %s222
        %s224 = smul.addr %s223, 4
        %s225 = scalar_lea.vmem %s0, %s224
        %p226 = pneg %p54
        %p227 = pneg %p51
        %p228 = pneg %p75
        %p229 = pneg %p72
        %p230 = pneg %p96
        %p231 = pneg %p93
        %p232 = pneg %p117
        %p233 = pneg %p114
        %p234 = pneg %p138
        %p235 = pneg %p135
        %p236 = pneg %p166
        %p237 = pneg %p163
        %s238 = sand.u32 %s153, 1
        %s239 = scalar_lea.sflag [#allocation3], %s238
        %s240 = sand.u32 %s153, 1
        %s241 = smul.addr %s240, 64
        %s242 = scalar_lea.vmem [#allocation2], %s241
        %s243 = smul.u32 2, %s24
        %p244 = scmp.lt.s32.totalorder %s23, 1
        %s245 = scalar_select %p244, %s23, 1
        %p246 = scmp.lt.s32.totalorder %s243, 1
        %s247 = scalar_select %p246, %s243, 1
        %s248 = smul.addr %s245, 2
        %s249 = sadd.s32 %s247, %s248
        %s250 = smul.addr %s249, 4
        %s251 = scalar_lea.vmem %s0, %s250
        %s252 = smul.u32 2, %s24
        %s253 = smul.u32 2, %s24
        %v254 = vld [vmem:[%s251] sm:$0xff]
        %v255 = vld [vmem:[%s2] sm:$0xff]
        %v256 = vld [vmem:[%s2 + $0x8] sm:$0xff]
        %v257 = vld [vmem:[%s4] sm:$0xff]
        %v258 = vld [vmem:[%s4 + $0x8] sm:$0xff]
        %v259 = vld [vmem:[%s4 + $0x10] sm:$0xff]
        %v260 = vld [vmem:[%s4 + $0x18] sm:$0xff]
        %v261 = vld [vmem:[%s1] sm:$0xff]
        %v262 = vld [vmem:[%s1 + $0x8] sm:$0xff]
        %264 = vset.pattern.permute.xlu0 0
        %265 = vperm.xlu0 %264, %v255
        %v266 = vpop.permute.xlu0 %265
        %269 = vset.pattern.permute.xlu0 0
        %270 = vperm.xlu0 %269, %v256
        %v271 = vpop.permute.xlu0 %270
        %v274 = vcombine.high %v254, %v254
        %vm275 = vcmask 31744
        %v277 = vsel %vm275, %v261, 0
        %v280 = vsel %vm275, %v262, 0
        %vm282 = vcmask 1043456
        %v283 = vsel %vm282, %v254, 0
        %v285 = vsel %vm282, %v274, 0
        %287 = vmatprep.subr.mxu0 0.0
        %288 = vmatpush1.msra.mxu0 0.0
        %289 = vmatprep.subr.mxu0 0.0
        %290 = vmatpush1.msra.mxu0 0.0
        %291 = vmatprep.subr.mxu0 0.0
        %292 = vmatpush1.msra.mxu0 0.0
        %293 = vmatprep.subr.mxu0 0.0
        %294 = vmatpush1.msra.mxu0 0.0
        %295 = vmatprep.subr.mxu0 0.0
        %296 = vmatpush1.msra.mxu0 0.0
        %297 = vmatprep.subr.mxu0 0.0
        %298 = vmatpush1.msra.mxu0 0.0
        %299 = vmatprep.subr.mxu0 0.0
        %300 = vmatpush1.msra.mxu0 0.0
        %301 = vmatprep.subr.mxu0 0.0
        %302 = vmatpush1.msra.mxu0 0.0
        %303 = vmatprep.subr.mxu0 0.0
        %304 = vmatpush1.msra.mxu0 0.0
        %305 = vmatprep.subr.mxu0 0.0
        %306 = vmatpush1.msra.mxu0 0.0
        %307 = vmatprep.subr.mxu0 0.0
        %308 = vmatpush1.msra.mxu0 0.0
        %309 = vmatprep.subr.mxu0 0.0
        %310 = vmatpush1.msra.mxu0 0.0
        %311 = vmatprep.subr.mxu0 0.0
        %312 = vmatpush1.msra.mxu0 0.0
        %313 = vmatprep.subr.mxu0 0.0
        %314 = vmatpush1.msra.mxu0 0.0
        %315 = vmatprep.subr.mxu0 0.0
        %316 = vmatpush1.msra.mxu0 0.0
        %317 = vmatprep.subr.mxu0 %v285
        %318 = vmatpush1.msra.mxu0 %v283
        %319 = vmatprep.subr.mxu0 0.0
        %320 = vmatpush2.msra.mxu0 0.0
        %321 = vmatprep.subr.mxu0 0.0
        %322 = vmatpush2.msra.mxu0 0.0
        %323 = vmatprep.subr.mxu0 0.0
        %324 = vmatpush2.msra.mxu0 0.0
        %325 = vmatprep.subr.mxu0 0.0
        %326 = vmatpush2.msra.mxu0 0.0
        %327 = vmatprep.subr.mxu0 0.0
        %328 = vmatpush2.msra.mxu0 0.0
        %329 = vmatprep.subr.mxu0 0.0
        %330 = vmatpush2.msra.mxu0 0.0
        %331 = vmatprep.subr.mxu0 0.0
        %332 = vmatpush2.msra.mxu0 0.0
        %333 = vmatprep.subr.mxu0 0.0
        %334 = vmatpush2.msra.mxu0 0.0
        %335 = vmatprep.subr.mxu0 0.0
        %336 = vmatpush2.msra.mxu0 0.0
        %337 = vmatprep.subr.mxu0 0.0
        %338 = vmatpush2.msra.mxu0 0.0
        %339 = vmatprep.subr.mxu0 0.0
        %340 = vmatpush2.msra.mxu0 0.0
        %341 = vmatprep.subr.mxu0 0.0
        %342 = vmatpush2.msra.mxu0 0.0
        %343 = vmatprep.subr.mxu0 0.0
        %344 = vmatpush2.msra.mxu0 0.0
        %345 = vmatprep.subr.mxu0 0.0
        %346 = vmatpush2.msra.mxu0 0.0
        %347 = vmatprep.subr.mxu0 0.0
        %348 = vmatpush2.msra.mxu0 0.0
        %349 = vmatprep.subr.mxu0 0.0
        %350 = vmatpush2.msra.mxu0 0.0
        %351 = vmatprep.mubr.f32.mxu0 0.0
        %352 = vmatmul.mubr.f32.gmra.mxu0 %v277
        %v353 = vpop.f32.mrf.mxu0
        %v354 = vadd.f32 %v266, %v353
        %v355 = vpop.f32.mrf.mxu0
        %v356 = vadd.f32 %v266, %v355
        %357 = vmatprep.mubr.f32.mxu0 0.0
        %358 = vmatmul.mubr.f32.gmra.mxu0 %v280
        %v359 = vpop.f32.mrf.mxu0
        %v360 = vadd.f32 %v271, %v359
        %v361 = vpop.f32.mrf.mxu0
        %v362 = vadd.f32 %v271, %v361
        %363 = vdwg.mxu0
        %v364 = vadd.f32 %v354, %v360
        %v365 = vrot.slane %v364, 4
        %v366 = vadd.f32 %v364, %v365
        %v367 = vrot.slane %v366, 2
        %v368 = vadd.f32 %v366, %v367
        %v369 = vrot.slane %v368, 1
        %v370 = vadd.f32 %v368, %v369
        %v371 = vadd.f32 %v356, %v362
        %v372 = vrot.slane %v371, 4
        %v373 = vadd.f32 %v371, %v372
        %v374 = vrot.slane %v373, 2
        %v375 = vadd.f32 %v373, %v374
        %v376 = vrot.slane %v375, 1
        %v377 = vadd.f32 %v375, %v376
        %v378 = vrcp.pop 16.0
        %v379 = vmul.f32 %v370, %v378
        %v380 = vmul.f32 %v377, %v378
        %v381 = vsub.f32 %v354, %v379
        %v382 = vsub.f32 %v356, %v380
        %v383 = vsub.f32 %v360, %v379
        %v384 = vsub.f32 %v362, %v380
        %v385 = vmul.f32 %v381, %v381
        %v386 = vmul.f32 %v382, %v382
        %v387 = vmul.f32 %v383, %v383
        %v388 = vmul.f32 %v384, %v384
        %v389 = vadd.f32 %v385, %v387
        %v390 = vrot.slane %v389, 4
        %v391 = vadd.f32 %v389, %v390
        %v392 = vrot.slane %v391, 2
        %v393 = vadd.f32 %v391, %v392
        %v394 = vrot.slane %v393, 1
        %v395 = vadd.f32 %v393, %v394
        %v396 = vadd.f32 %v386, %v388
        %v397 = vrot.slane %v396, 4
        %v398 = vadd.f32 %v396, %v397
        %v399 = vrot.slane %v398, 2
        %v400 = vadd.f32 %v398, %v399
        %v401 = vrot.slane %v400, 1
        %v402 = vadd.f32 %v400, %v401
        %v403 = vmul.f32 %v395, %v378
        %v404 = vmul.f32 %v402, %v378
        %v405 = vadd.f32 %v403, 1e-05
        %v406 = vadd.f32 %v404, 1e-05
        %v407 = vrsqrt.pop %v405
        %v408 = vrsqrt.pop %v406
        %v409 = vmul.f32 %v381, %v407
        %v410 = vmul.f32 %v382, %v408
        %v411 = vmul.f32 %v383, %v407
        %v412 = vmul.f32 %v384, %v408
        %413 = vset.pattern.permute.xlu0 1
        %414 = vperm.xlu0 %413, %v255
        %v415 = vpop.permute.xlu0 %414
        %417 = vset.pattern.permute.xlu0 1
        %418 = vperm.xlu0 %417, %v256
        %v419 = vpop.permute.xlu0 %418
        %v421 = vmul.f32 %v409, %v415
        %v422 = vmul.f32 %v410, %v415
        %v423 = vmul.f32 %v411, %v419
        %v424 = vmul.f32 %v412, %v419
        %425 = vset.pattern.permute.xlu0 2
        %426 = vperm.xlu0 %425, %v255
        %v427 = vpop.permute.xlu0 %426
        %429 = vset.pattern.permute.xlu0 2
        %430 = vperm.xlu0 %429, %v256
        %v431 = vpop.permute.xlu0 %430
        %v433 = vadd.f32 %v421, %v427
        %v434 = vadd.f32 %v422, %v427
        %v435 = vadd.f32 %v423, %v431
        %v436 = vadd.f32 %v424, %v431
        %v437 = vmul.f32 %v433, 0.5
        %v438 = vmul.f32 %v434, 0.5
        %v439 = vmul.f32 %v435, 0.5
        %v440 = vmul.f32 %v436, 0.5
        %v441 = vmul.f32 %v433, 0.70710677
        %v442 = vmul.f32 %v434, 0.70710677
        %v443 = vmul.f32 %v435, 0.70710677
        %v444 = vmul.f32 %v436, 0.70710677
        %v445 = verf.f32.pop %v441
        %v446 = verf.f32.pop %v442
        %v447 = verf.f32.pop %v443
        %v448 = verf.f32.pop %v444
        %v449 = vadd.f32 %v445, 1.0
        %v450 = vadd.f32 %v446, 1.0
        %v451 = vadd.f32 %v447, 1.0
        %v452 = vadd.f32 %v448, 1.0
        %v453 = vmul.f32 %v437, %v449
        %v454 = vmul.f32 %v438, %v450
        %v455 = vmul.f32 %v439, %v451
        %v456 = vmul.f32 %v440, %v452
        %v457 = vld [vmem:[%s3] sm:$0xff]
        %v458 = vld [vmem:[%s3 + $0x8] sm:$0xff]
        %v459 = vld [vmem:[%s3 + $0x10] sm:$0xff]
        %v460 = vld [vmem:[%s3 + $0x18] sm:$0xff]
        %462 = vset.pattern.permute.xlu0 0
        %463 = vperm.xlu0 %462, %v257
        %v464 = vpop.permute.xlu0 %463
        %467 = vset.pattern.permute.xlu0 0
        %468 = vperm.xlu0 %467, %v258
        %v469 = vpop.permute.xlu0 %468
        %472 = vset.pattern.permute.xlu0 0
        %473 = vperm.xlu0 %472, %v259
        %v474 = vpop.permute.xlu0 %473
        %477 = vset.pattern.permute.xlu0 0
        %478 = vperm.xlu0 %477, %v260
        %v479 = vpop.permute.xlu0 %478
        %vm481 = vcmask 130048
        %v483 = vsel %vm481, %v457, 0
        %v486 = vsel %vm481, %v458, 0
        %v489 = vsel %vm481, %v459, 0
        %v492 = vsel %vm481, %v460, 0
        %494 = vmatprep.subr.mxu0 0.0
        %495 = vmatpush1.msra.mxu0 0.0
        %496 = vmatprep.subr.mxu0 0.0
        %497 = vmatpush1.msra.mxu0 0.0
        %498 = vmatprep.subr.mxu0 0.0
        %499 = vmatpush1.msra.mxu0 0.0
        %500 = vmatprep.subr.mxu0 0.0
        %501 = vmatpush1.msra.mxu0 0.0
        %502 = vmatprep.subr.mxu0 0.0
        %503 = vmatpush1.msra.mxu0 0.0
        %504 = vmatprep.subr.mxu0 0.0
        %505 = vmatpush1.msra.mxu0 0.0
        %506 = vmatprep.subr.mxu0 0.0
        %507 = vmatpush1.msra.mxu0 0.0
        %508 = vmatprep.subr.mxu0 0.0
        %509 = vmatpush1.msra.mxu0 0.0
        %510 = vmatprep.subr.mxu0 0.0
        %511 = vmatpush1.msra.mxu0 0.0
        %512 = vmatprep.subr.mxu0 0.0
        %513 = vmatpush1.msra.mxu0 0.0
        %514 = vmatprep.subr.mxu0 0.0
        %515 = vmatpush1.msra.mxu0 0.0
        %516 = vmatprep.subr.mxu0 0.0
        %517 = vmatpush1.msra.mxu0 0.0
        %518 = vmatprep.subr.mxu0 0.0
        %519 = vmatpush1.msra.mxu0 0.0
        %520 = vmatprep.subr.mxu0 0.0
        %521 = vmatpush1.msra.mxu0 0.0
        %522 = vmatprep.subr.mxu0 %v456
        %523 = vmatpush1.msra.mxu0 %v455
        %524 = vmatprep.subr.mxu0 %v454
        %525 = vmatpush1.msra.mxu0 %v453
        %526 = vmatprep.subr.mxu0 0.0
        %527 = vmatpush2.msra.mxu0 0.0
        %528 = vmatprep.subr.mxu0 0.0
        %529 = vmatpush2.msra.mxu0 0.0
        %530 = vmatprep.subr.mxu0 0.0
        %531 = vmatpush2.msra.mxu0 0.0
        %532 = vmatprep.subr.mxu0 0.0
        %533 = vmatpush2.msra.mxu0 0.0
        %534 = vmatprep.subr.mxu0 0.0
        %535 = vmatpush2.msra.mxu0 0.0
        %536 = vmatprep.subr.mxu0 0.0
        %537 = vmatpush2.msra.mxu0 0.0
        %538 = vmatprep.subr.mxu0 0.0
        %539 = vmatpush2.msra.mxu0 0.0
        %540 = vmatprep.subr.mxu0 0.0
        %541 = vmatpush2.msra.mxu0 0.0
        %542 = vmatprep.subr.mxu0 0.0
        %543 = vmatpush2.msra.mxu0 0.0
        %544 = vmatprep.subr.mxu0 0.0
        %545 = vmatpush2.msra.mxu0 0.0
        %546 = vmatprep.subr.mxu0 0.0
        %547 = vmatpush2.msra.mxu0 0.0
        %548 = vmatprep.subr.mxu0 0.0
        %549 = vmatpush2.msra.mxu0 0.0
        %550 = vmatprep.subr.mxu0 0.0
        %551 = vmatpush2.msra.mxu0 0.0
        %552 = vmatprep.subr.mxu0 0.0
        %553 = vmatpush2.msra.mxu0 0.0
        %554 = vmatprep.subr.mxu0 0.0
        %555 = vmatpush2.msra.mxu0 0.0
        %556 = vmatprep.subr.mxu0 0.0
        %557 = vmatpush2.msra.mxu0 0.0
        %558 = vmatprep.mubr.f32.mxu0 0.0
        %559 = vmatmul.mubr.f32.gmra.mxu0 %v483
        %v560 = vpop.f32.mrf.mxu0
        %v561 = vadd.f32 %v464, %v560
        %v562 = vpop.f32.mrf.mxu0
        %v563 = vadd.f32 %v464, %v562
        %564 = vmatprep.mubr.f32.mxu0 0.0
        %565 = vmatmul.mubr.f32.gmra.mxu0 %v486
        %v566 = vpop.f32.mrf.mxu0
        %v567 = vadd.f32 %v469, %v566
        %v568 = vpop.f32.mrf.mxu0
        %v569 = vadd.f32 %v469, %v568
        %570 = vmatprep.mubr.f32.mxu0 0.0
        %571 = vmatmul.mubr.f32.gmra.mxu0 %v489
        %v572 = vpop.f32.mrf.mxu0
        %v573 = vadd.f32 %v474, %v572
        %v574 = vpop.f32.mrf.mxu0
        %v575 = vadd.f32 %v474, %v574
        %576 = vmatprep.mubr.f32.mxu0 0.0
        %577 = vmatmul.mubr.f32.gmra.mxu0 %v492
        %v578 = vpop.f32.mrf.mxu0
        %v579 = vadd.f32 %v479, %v578
        %v580 = vpop.f32.mrf.mxu0
        %v581 = vadd.f32 %v479, %v580
        %582 = vdwg.mxu0
        %v583 = vadd.f32 %v561, %v567
        %v584 = vadd.f32 %v583, %v573
        %v585 = vadd.f32 %v584, %v579
        %v586 = vrot.slane %v585, 4
        %v587 = vadd.f32 %v585, %v586
        %v588 = vrot.slane %v587, 2
        %v589 = vadd.f32 %v587, %v588
        %v590 = vrot.slane %v589, 1
        %v591 = vadd.f32 %v589, %v590
        %v592 = vadd.f32 %v563, %v569
        %v593 = vadd.f32 %v592, %v575
        %v594 = vadd.f32 %v593, %v581
        %v595 = vrot.slane %v594, 4
        %v596 = vadd.f32 %v594, %v595
        %v597 = vrot.slane %v596, 2
        %v598 = vadd.f32 %v596, %v597
        %v599 = vrot.slane %v598, 1
        %v600 = vadd.f32 %v598, %v599
        %v601 = vrcp.pop 32.0
        %v602 = vmul.f32 %v591, %v601
        %v603 = vmul.f32 %v600, %v601
        %v604 = vsub.f32 %v561, %v602
        %v605 = vsub.f32 %v563, %v603
        %v606 = vsub.f32 %v567, %v602
        %v607 = vsub.f32 %v569, %v603
        %v608 = vsub.f32 %v573, %v602
        %v609 = vsub.f32 %v575, %v603
        %v610 = vsub.f32 %v579, %v602
        %v611 = vsub.f32 %v581, %v603
        %v612 = vmul.f32 %v604, %v604
        %v613 = vmul.f32 %v605, %v605
        %v614 = vmul.f32 %v606, %v606
        %v615 = vmul.f32 %v607, %v607
        %v616 = vmul.f32 %v608, %v608
        %v617 = vmul.f32 %v609, %v609
        %v618 = vmul.f32 %v610, %v610
        %v619 = vmul.f32 %v611, %v611
        %v620 = vadd.f32 %v612, %v614
        %v621 = vadd.f32 %v620, %v616
        %v622 = vadd.f32 %v621, %v618
        %v623 = vrot.slane %v622, 4
        %v624 = vadd.f32 %v622, %v623
        %v625 = vrot.slane %v624, 2
        %v626 = vadd.f32 %v624, %v625
        %v627 = vrot.slane %v626, 1
        %v628 = vadd.f32 %v626, %v627
        %v629 = vadd.f32 %v613, %v615
        %v630 = vadd.f32 %v629, %v617
        %v631 = vadd.f32 %v630, %v619
        %v632 = vrot.slane %v631, 4
        %v633 = vadd.f32 %v631, %v632
        %v634 = vrot.slane %v633, 2
        %v635 = vadd.f32 %v633, %v634
        %v636 = vrot.slane %v635, 1
        %v637 = vadd.f32 %v635, %v636
        %v638 = vmul.f32 %v628, %v601
        %v639 = vmul.f32 %v637, %v601
        %v640 = vadd.f32 %v638, 1e-05
        %v641 = vadd.f32 %v639, 1e-05
        %v642 = vrsqrt.pop %v640
        %v643 = vrsqrt.pop %v641
        %v644 = vmul.f32 %v604, %v642
        %v645 = vmul.f32 %v605, %v643
        %v646 = vmul.f32 %v606, %v642
        %v647 = vmul.f32 %v607, %v643
        %v648 = vmul.f32 %v608, %v642
        %v649 = vmul.f32 %v609, %v643
        %v650 = vmul.f32 %v610, %v642
        %v651 = vmul.f32 %v611, %v643
        %652 = vset.pattern.permute.xlu0 1
        %653 = vperm.xlu0 %652, %v257
        %v654 = vpop.permute.xlu0 %653
        %656 = vset.pattern.permute.xlu0 1
        %657 = vperm.xlu0 %656, %v258
        %v658 = vpop.permute.xlu0 %657
        %660 = vset.pattern.permute.xlu0 1
        %661 = vperm.xlu0 %660, %v259
        %v662 = vpop.permute.xlu0 %661
        %664 = vset.pattern.permute.xlu0 1
        %665 = vperm.xlu0 %664, %v260
        %v666 = vpop.permute.xlu0 %665
        %v668 = vmul.f32 %v644, %v654
        %v669 = vmul.f32 %v645, %v654
        %v670 = vmul.f32 %v646, %v658
        %v671 = vmul.f32 %v647, %v658
        %v672 = vmul.f32 %v648, %v662
        %v673 = vmul.f32 %v649, %v662
        %v674 = vmul.f32 %v650, %v666
        %v675 = vmul.f32 %v651, %v666
        %676 = vset.pattern.permute.xlu0 2
        %677 = vperm.xlu0 %676, %v257
        %v678 = vpop.permute.xlu0 %677
        %680 = vset.pattern.permute.xlu0 2
        %681 = vperm.xlu0 %680, %v258
        %v682 = vpop.permute.xlu0 %681
        %684 = vset.pattern.permute.xlu0 2
        %685 = vperm.xlu0 %684, %v259
        %v686 = vpop.permute.xlu0 %685
        %688 = vset.pattern.permute.xlu0 2
        %689 = vperm.xlu0 %688, %v260
        %v690 = vpop.permute.xlu0 %689
        %v692 = vadd.f32 %v668, %v678
        %v693 = vadd.f32 %v669, %v678
        %v694 = vadd.f32 %v670, %v682
        %v695 = vadd.f32 %v671, %v682
        %v696 = vadd.f32 %v672, %v686
        %v697 = vadd.f32 %v673, %v686
        %v698 = vadd.f32 %v674, %v690
        %v699 = vadd.f32 %v675, %v690
        %700 = vst [vmem:[%s242] sm:$0xff] %v692
        %701 = vst [vmem:[%s242 + $0x8] sm:$0xff] %v693
        %702 = vst [vmem:[%s242 + $0x10] sm:$0xff] %v694
        %703 = vst [vmem:[%s242 + $0x18] sm:$0xff] %v695
        %704 = vst [vmem:[%s242 + $0x20] sm:$0xff] %v696
        %705 = vst [vmem:[%s242 + $0x28] sm:$0xff] %v697
        %706 = vst [vmem:[%s242 + $0x30] sm:$0xff] %v698
        %707 = vst [vmem:[%s242 + $0x38] sm:$0xff] %v699
        %s708 = sand.u32 %s153, 1
        %s709 = scalar_lea.sflag [#allocation3], %s708
        %s710 = sand.u32 %s153, 1
        %s711 = smul.addr %s710, 64
        %s712 = scalar_lea.vmem [#allocation2], %s711
        // Predicated region
        $region41: #{tpu_custom_call.1} parent=39 // pred_check
          %p713 = pneg %p163
        $region42: #{tpu_custom_call.1} parent=39 // pred_check_branch
          %715 = sbr.rel (%p713) target = $region44
        $region43: #{tpu_custom_call.1} parent=39 // pred_region
          %s716 = smul.u32 2, %s24
          %s718 = ssub.s32 1024, 1024
          %719 = vsyncadd %s709, %s718
          %s720 = smul.addr %s23, 8
          %s721 = sadd.s32 %s716, %s720
          %s722 = smul.addr %s721, 128
          %s723 = scalar_lea.hbm %s5, %s722
          %s724 = sshll.u32 %s712, 4
          %s725 = int_to_ptr.vmem [resolvable:$true] %s724
          %730 = dma.vmem_to_hbm [thread:$0]  %s725, 1024, %s723, %s709, 256, 256, 16
        $region44: #{tpu_custom_call.1} parent=39 // pred_fallthru
          _
      $region40: #{tpu_custom_call.1} parent=5 // pred_fallthru
        _
      %p731 = scmp.le.s32.totalorder 2, %s14
      // Predicated region
      $region45: #{tpu_custom_call.1} parent=5 // pred_check
        %p732 = pneg %p731
      $region46: #{tpu_custom_call.1} parent=5 // pred_check_branch
        %734 = sbr.rel (%p732) target = $region48
      $region47: #{tpu_custom_call.1} parent=5 // pred_region
        %s735 = ssub.s32 %s14, 2
        // Predicated region
        $region49: #{tpu_custom_call.1} parent=47 // pred_check
          %p736 = pneg %p169
        $region50: #{tpu_custom_call.1} parent=47 // pred_check_branch
          %738 = sbr.rel (%p736) target = $region52
        $region51: #{tpu_custom_call.1} parent=47 // pred_region
          %s739 = sand.u32 %s154, 1
          %s740 = scalar_lea.sflag [#allocation3], %s739
          %s741 = sand.u32 %s154, 1
          %s742 = smul.addr %s741, 64
          %s743 = scalar_lea.vmem [#allocation2], %s742
          %744 = dma.done %s740, 1024
        $region52: #{tpu_custom_call.1} parent=47 // pred_fallthru
          _
      $region48: #{tpu_custom_call.1} parent=5 // pred_fallthru
        _
    $region6: #{tpu_custom_call.1} parent=1 // loop_footer
      %s18 = sadd.s32 1, %s14
    $region7: #{tpu_custom_call.1} parent=1 // loop_footer_branch
      %13 = sbr.rel target = $region3
    $region8: #{tpu_custom_call.1} parent=1 // loop_exit
      _
    %745 = vsyncpa [#allocation3], 1
    %s746 = scalar_lea.sflag [#allocation3], 1
    %747 = vsyncpa %s746, 1

</llo_original>
